<compile_context>
chip_gen: v5e
topology: v5e:2x2
jax: 0.10.0
libtpu: 0.0.40
codegen_flags: <defaults>
</compile_context>

<pallas_src>
import functools

import jax
import jax.numpy as jnp
import numpy as np
from jax import lax
from jax.experimental import pallas as pl
from jax.experimental.pallas import tpu as pltpu

LANE = 128          # lane width (last-dim alignment)
SUBLANE_BF16 = 16   # bf16 sublane packing


def _round_up(x, m):
    return (x + m - 1) // m * m


# ----------------------------------------------------------------------------
# Fused Pallas kernel: both branches' projector forward, x-branch VJP(ones),
# wave residuals and a lane-dense per-tile partial sum of squares.
# ----------------------------------------------------------------------------
def resonance_fused_kernel(
    scal_ref,              # SMEM (2,) f32: [mu_x, k_x]
    fx_ref, fy_ref,        # VMEM (tb, E_p) bf16 feature tiles (x / y branch)
    w1_ref, b1_ref,        # VMEM (E_p, H_p) bf16, (1, H_p) f32   (BN folded)
    w2_ref, b2_ref,        # VMEM (H_p, H_p) bf16, (1, H_p) f32   (BN folded)
    w3_ref, b3_ref,        # VMEM (H_p, E_p) bf16, (1, E_p) f32
    gsum_ref,              # VMEM (1, H_p) f32: ones(1,E) @ w3_fwd.T (precomputed)
    out_ref,               # VMEM (1, 8, 128) f32: per-tile partial sum (lane dense)
    *, n_valid_rows,       # static: number of real (non-padded) batch rows
):
    w1 = w1_ref[...]
    w2 = w2_ref[...]
    w3 = w3_ref[...]
    b1 = b1_ref[...]
    b2 = b2_ref[...]
    b3 = b3_ref[...]

    def fwd(x_bf16):
        # bf16 operands, f32 MXU accumulation.  Only the ReLU outputs / masks
        # stay live (pre-activations die immediately) -> lower vreg pressure.
        a1 = jnp.dot(x_bf16, w1, preferred_element_type=jnp.float32) + b1
        r1 = jnp.maximum(a1, 0.0)
        m1 = r1 > 0.0
        a2 = jnp.dot(r1.astype(jnp.bfloat16), w2,
                     preferred_element_type=jnp.float32) + b2
        r2 = jnp.maximum(a2, 0.0)
        m2 = r2 > 0.0
        wave = jnp.dot(r2.astype(jnp.bfloat16), w3,
                       preferred_element_type=jnp.float32) + b3
        return m1, m2, wave

    tb = fx_ref.shape[0]

    # ---- x branch: forward + VJP with cotangent ones_like(wave) ------------
    # The projector with eval-mode (folded) BN is piecewise linear, so its
    # second derivative is 0 a.e. -> dx2 == 0 and only dgrad is needed.
    m1x, m2x, wave_x = fwd(fx_ref[...])
    g2 = jnp.where(m2x, gsum_ref[...], 0.0).astype(jnp.bfloat16)
    g1 = lax.dot_general(g2, w2, (((1,), (1,)), ((), ())),
                         preferred_element_type=jnp.float32)       # g2 @ w2.T
    g1 = jnp.where(m1x, g1, 0.0).astype(jnp.bfloat16)
    dgrad = lax.dot_general(g1, w1, (((1,), (1,)), ((), ())),
                            preferred_element_type=jnp.float32)    # g1 @ w1.T
    # NOTE: single weight copy; backward NT dots via dot_general.  On v6e a
    # second pre-transposed copy may be worth benchmarking (128 MiB VMEM).

    # ---- y branch: forward only (its dgrad is multiplied by exactly 0) -----
    _, _, wave_y = fwd(fy_ref[...])

    # ---- residuals, padded-row masking, per-tile partial sum ---------------
    mu_x = scal_ref[0]
    k_x = scal_ref[1]
    row = lax.broadcasted_iota(jnp.int32, (tb, 1), 0) + pl.program_id(0) * tb
    valid = (row < n_valid_rows).astype(jnp.float32)               # (tb, 1)
    wavy_x = (mu_x * dgrad + k_x * wave_x) * valid                 # dx2 == 0
    wavy_y = wave_y * valid                                        # w_y^2*dy2 == 0
    total = jnp.sum(wavy_x * wavy_x) + jnp.sum(wavy_y * wavy_y)
    # Lane-dense store of the per-tile partial; final reduce in the wrapper.
    out_ref[...] = jnp.full((1, 8, 128), total, dtype=jnp.float32)


# ----------------------------------------------------------------------------
# Wrapper: host-side constant folding, padding, tiling, pallas_call
# ----------------------------------------------------------------------------
def fused_branch_sumsq(feat_x, feat_y, mu_x, k_x, p):
    """One Pallas launch for both branches; returns sum(wavy_x^2)+sum(wavy_y^2)."""
    B, E = feat_x.shape
    H = p["w1"].shape[0]

    # Eval-mode BN folded into weights/biases, one pre-transposed copy each,
    # plus the ones @ w3_fwd.T column sum for the first backward step.
    w1 = p["w1"].T * p["s1"][None, :]                  # (E, H) f32
    b1 = p["b1"] * p["s1"] + p["t1"]                   # (H,)
    w2 = p["w2"].T * p["s2"][None, :]                  # (H, H)
    b2 = p["b2"] * p["s2"] + p["t2"]
    w3 = p["w3"].T                                     # (H, E)
    b3 = p["b3"]                                       # (E,)
    gsum = jnp.sum(w3, axis=1)                         # (H,) == ones(1,E) @ w3_fwd.T

    # Lane/sublane-aligned padded shapes and batch tiling.
    E_p = _round_up(E, LANE)
    H_p = _round_up(H, LANE)
    tb = 256 if B >= 256 else _round_up(max(B, 1), SUBLANE_BF16)
    B_p = _round_up(B, tb)
    nt = B_p // tb

    def pad2(a, r, c):
        return jnp.pad(a, ((0, r - a.shape[0]), (0, c - a.shape[1])))

    def pad1(a, c):
        return jnp.pad(a, (0, c - a.shape[0]))

    # bf16 weights/features; biases / gsum / scalars stay f32.
    fx = pad2(feat_x, B_p, E_p).astype(jnp.bfloat16)
    fy = pad2(feat_y, B_p, E_p).astype(jnp.bfloat16)
    w1p = pad2(w1, E_p, H_p).astype(jnp.bfloat16)
    w2p = pad2(w2, H_p, H_p).astype(jnp.bfloat16)
    w3p = pad2(w3, H_p, E_p).astype(jnp.bfloat16)
    b1p = pad1(b1, H_p)[None, :].astype(jnp.float32)
    b2p = pad1(b2, H_p)[None, :].astype(jnp.float32)
    b3p = pad1(b3, E_p)[None, :].astype(jnp.float32)
    gsump = pad1(gsum, H_p)[None, :].astype(jnp.float32)
    scal = jnp.stack([mu_x, k_x]).astype(jnp.float32)

    # VMEM budget (resident bf16 weights + double-buffered feature tiles +
    # activation headroom) and a cost estimate for XLA's scheduler.
    bytes_w = 2 * (E_p * H_p + H_p * H_p + H_p * E_p) * 2     # bf16, double-buffered
    bytes_f = 2 * 2 * tb * E_p * 2                            # fx+fy, double-buffered
    bytes_b = (3 * H_p + 2 * E_p) * 4 * 2
    bytes_act = 8 * tb * H_p * 4 + 6 * tb * E_p * 4
    est = bytes_w + bytes_f + bytes_b + bytes_act + (1 << 20)
    vmem_limit = int(min(64 * 2**20, max(32 * 2**20, 2 * est)))

    flops = 2 * B_p * (2 * (E_p * H_p + H_p * H_p + H_p * E_p)   # fwd, 2 branches
                       + (H_p * H_p + H_p * E_p))                # bwd, x branch
    bytes_accessed = (bytes_w // 2 + 2 * B_p * E_p * 2
                      + (3 * H_p + 2 * E_p) * 4 + nt * 8 * 128 * 4)
    cost = pl.CostEstimate(flops=int(flops), transcendentals=0,
                           bytes_accessed=int(bytes_accessed))

    def const2(shape):
        return pl.BlockSpec(shape, lambda i: (0, 0))

    out = pl.pallas_call(
        functools.partial(resonance_fused_kernel, n_valid_rows=B),
        out_shape=jax.ShapeDtypeStruct((nt, 8, 128), jnp.float32),
        grid=(nt,),
        in_specs=[
            pl.BlockSpec(memory_space=pltpu.MemorySpace.SMEM),   # [mu_x, k_x]
            pl.BlockSpec((tb, E_p), lambda i: (i, 0)),           # fx tile
            pl.BlockSpec((tb, E_p), lambda i: (i, 0)),           # fy tile
            const2((E_p, H_p)), const2((1, H_p)),                # w1, b1
            const2((H_p, H_p)), const2((1, H_p)),                # w2, b2
            const2((H_p, E_p)), const2((1, E_p)),                # w3, b3
            const2((1, H_p)),                                    # gsum
        ],
        out_specs=pl.BlockSpec((1, 8, 128), lambda i: (i, 0, 0)),
        compiler_params=pltpu.CompilerParams(
            dimension_semantics=("parallel",),
            vmem_limit_bytes=vmem_limit),
        cost_estimate=cost,
    )(scal, fx, fy, w1p, b1p, w2p, b2p, w3p, b3p, gsump)
    return jnp.sum(out[:, 0, 0])


# ----------------------------------------------------------------------------
# Full ResonanceNet forward (glue in plain JAX, hot path in the Pallas kernel)
# ----------------------------------------------------------------------------
def backbone_feats(img, p):
    # Stand-in backbone: global average pool (NCHW) + linear C->E.
    return jnp.mean(img, axis=(2, 3)) @ p["wb"].T + p["bb"]


def resonance_net_loss(x_img, y_img, p, wave_coeff=1.0, res_coeff=1.0):
    x_phy = backbone_feats(x_img, p)
    y_phy = backbone_feats(y_img, p)
    B, E = x_phy.shape
    n = jnp.float32(B * E)

    mu_x = p["mu_x"][0]
    k_x = p["k_x"][0]
    w_y = p["w_y"][0]

    loss_wave = fused_branch_sumsq(x_phy, y_phy, mu_x, k_x, p) / n
    w_x = jnp.sqrt(k_x)                                    # k_x ** 0.5
    loss_res = 1.0 / jnp.sqrt((w_y ** 2 - w_x ** 2) ** 2 + w_y ** 2 * mu_x ** 2)
    return wave_coeff * loss_wave + res_coeff * loss_res


# ----------------------------------------------------------------------------
# Reference 1: plain-JAX mirror of the kernel's mixed-precision math (tight)
# ----------------------------------------------------------------------------
def mixed_branch_sumsq_ref(feat_x, feat_y, mu_x, k_x, p):
    bf = jnp.bfloat16
    w1 = (p["w1"].T * p["s1"][None, :]).astype(bf)
    b1 = p["b1"] * p["s1"] + p["t1"]
    w2 = (p["w2"].T * p["s2"][None, :]).astype(bf)
    b2 = p["b2"] * p["s2"] + p["t2"]
    w3f = p["w3"].T
    w3 = w3f.astype(bf)
    b3 = p["b3"]
    gsum = jnp.sum(w3f, axis=1)[None, :]

    def fwd(x):
        a1 = jnp.dot(x.astype(bf), w1, preferred_element_type=jnp.float32) + b1
        r1 = jnp.maximum(a1, 0.0)
        a2 = jnp.dot(r1.astype(bf), w2, preferred_element_type=jnp.float32) + b2
        r2 = jnp.maximum(a2, 0.0)
        wave = jnp.dot(r2.astype(bf), w3, preferred_element_type=jnp.float32) + b3
        return r1 > 0.0, r2 > 0.0, wave

    m1, m2, wave_x = fwd(feat_x)
    g2 = jnp.where(m2, gsum, 0.0).astype(bf)
    g1 = lax.dot_general(g2, w2, (((1,), (1,)), ((), ())),
                         preferred_element_type=jnp.float32)
    g1 = jnp.where(m1, g1, 0.0).astype(bf)
    dgrad = lax.dot_general(g1, w1, (((1,), (1,)), ((), ())),
                            preferred_element_type=jnp.float32)
    _, _, wave_y = fwd(feat_y)
    wavy_x = mu_x * dgrad + k_x * wave_x
    return jnp.sum(wavy_x ** 2) + jnp.sum(wave_y ** 2)


# ----------------------------------------------------------------------------
# Reference 2: pure-f32 module semantics via jax.vjp (validates the derivation)
# ----------------------------------------------------------------------------
def _projector_ref(feat, p):
    h1 = feat @ p["w1"].T + p["b1"]
    a1 = h1 * p["s1"] + p["t1"]
    r1 = jnp.maximum(a1, 0.0)
    h2 = r1 @ p["w2"].T + p["b2"]
    a2 = h2 * p["s2"] + p["t2"]
    r2 = jnp.maximum(a2, 0.0)
    return r2 @ p["w3"].T + p["b3"]


def _ref_branch(feat, p):
    def first_grad(f):
        wave, vjp = jax.vjp(lambda ff: _projector_ref(ff, p), f)
        return vjp(jnp.ones_like(wave))[0], wave

    (d, wave), vjp2 = jax.vjp(first_grad, feat, has_aux=False)
    d2 = vjp2((jnp.ones_like(d), jnp.zeros_like(wave)))[0]
    return wave, d, d2


def resonance_net_loss_ref(x_img, y_img, p, wave_coeff=1.0, res_coeff=1.0):
    x_phy, y_phy = backbone_feats(x_img, p), backbone_feats(y_img, p)
    mu_x, k_x, w_y = p["mu_x"][0], p["k_x"][0], p["w_y"][0]
    wave_x, dx, dx2 = _ref_branch(x_phy, p)
    wave_y, dy, dy2 = _ref_branch(y_phy, p)
    wavy_x = dx2 + mu_x * dx + k_x * wave_x
    wavy_y = w_y ** 2 * dy2 + wave_y
    loss_wave = jnp.mean(wavy_x ** 2) + jnp.mean(wavy_y ** 2)
    w_x = jnp.sqrt(k_x)
    loss_res = 1.0 / jnp.sqrt((w_y ** 2 - w_x ** 2) ** 2 + w_y ** 2 * mu_x ** 2)
    return wave_coeff * loss_wave + res_coeff * loss_res


# ----------------------------------------------------------------------------
# Deterministic parameter construction + demo
# ----------------------------------------------------------------------------
def make_params(key, C, E):
    H = int(E * 0.75)
    ks = jax.random.split(key, 10)

    def linear(kw, kb, out_f, in_f):
        bound = 1.0 / np.sqrt(in_f)
        w = jax.random.uniform(kw, (out_f, in_f), jnp.float32, -bound, bound)
        b = jax.random.uniform(kb, (out_f,), jnp.float32, -bound, bound)
        return w, b

    w1, b1 = linear(ks[0], ks[1], H, E)
    w2, b2 = linear(ks[2], ks[3], H, H)
    w3, b3 = linear(ks[4], ks[5], E, H)
    wb, bb = linear(ks[6], ks[7], E, C)     # stand-in backbone projection

    # BatchNorm1d at default init, folded to affine (eval mode):
    eps = 1e-5
    gamma = jnp.ones((H,), jnp.float32)
    beta = jnp.zeros((H,), jnp.float32)
    rmean = jnp.zeros((H,), jnp.float32)
    rvar = jnp.ones((H,), jnp.float32)
    s = gamma / jnp.sqrt(rvar + eps)
    t = beta - rmean * s

    # scalar physics parameters (|.| keeps k_x**0.5 finite for the demo)
    z_x = jnp.abs(jax.random.normal(ks[8], (1,), jnp.float32))
    z_y = jnp.abs(jax.random.normal(ks[9], (1,), jnp.float32))
    return dict(
        w1=w1, b1=b1, s1=s, t1=t,
        w2=w2, b2=b2, s2=s, t2=t,
        w3=w3, b3=b3,
        wb=wb, bb=bb,
        mu_x=z_x * 10.0, k_x=z_x * 1000.0, w_y=z_y * 10.0,
    )


if __name__ == "__main__":
    key = jax.random.PRNGKey(0)
    k_p, k_x, k_y = jax.random.split(key, 3)

    B, C, Hs, Ws = 2, 4, 16, 16
    E = 32                                   # embedding; hidden = 24
    params = make_params(k_p, C, E)

    x = jax.random.normal(k_x, (B, C, Hs, Ws), jnp.float32)
    y = jax.random.normal(k_y, (B, C, Hs, Ws), jnp.float32)

    loss = resonance_net_loss(x, y, params)
    loss = jax.block_until_ready(loss)

    # Tight check: Pallas plumbing vs a plain-JAX mirror of the same
    # mixed-precision math (differences are accumulation-order only).
    fx = backbone_feats(x, params)
    fy = backbone_feats(y, params)
    got = jax.block_until_ready(
        fused_branch_sumsq(fx, fy, params["mu_x"][0], params["k_x"][0], params))
    want = jax.block_until_ready(
        mixed_branch_sumsq_ref(fx, fy, params["mu_x"][0], params["k_x"][0], params))
    np.testing.assert_allclose(np.asarray(got), np.asarray(want), rtol=2e-3)

    # Loose check: end-to-end loss vs the pure-f32 double-vjp reference
    # (gap is bf16 storage/operand rounding inside the kernel).
    loss_ref = jax.block_until_ready(resonance_net_loss_ref(x, y, params))
    np.testing.assert_allclose(np.asarray(loss), np.asarray(loss_ref),
                               rtol=8e-2, atol=1e-3)

    print("KERNEL_OK")
</pallas_src>

<mosaic_0001>
module attributes {stable_mosaic.version = 11 : i64} {
  func.func @resonance_fused_kernel(%arg0: i32, %arg1: memref<2xf32, #tpu.memory_space<smem>>, %arg2: memref<16x128xbf16, #tpu.memory_space<vmem>>, %arg3: memref<16x128xbf16, #tpu.memory_space<vmem>>, %arg4: memref<128x128xbf16, #tpu.memory_space<vmem>>, %arg5: memref<1x128xf32, #tpu.memory_space<vmem>>, %arg6: memref<128x128xbf16, #tpu.memory_space<vmem>>, %arg7: memref<1x128xf32, #tpu.memory_space<vmem>>, %arg8: memref<128x128xbf16, #tpu.memory_space<vmem>>, %arg9: memref<1x128xf32, #tpu.memory_space<vmem>>, %arg10: memref<1x128xf32, #tpu.memory_space<vmem>>, %arg11: memref<1x8x128xf32, #tpu.memory_space<vmem>>) attributes {dimension_semantics = [#tpu.dimension_semantics<parallel>], iteration_bounds = array<i64: 1>, scalar_prefetch = 0 : i64, scratch_operands = 0 : i64, tpu.core_type = #tpu.core_type<tc>, window_params = [{transform_indices = @transform_0, window_bounds = array<i64: 2>}, {transform_indices = @transform_1, window_bounds = array<i64: 16, 128>}, {transform_indices = @transform_2, window_bounds = array<i64: 16, 128>}, {pipeline_mode = #tpu.pipeline_mode<synchronous>, transform_indices = @transform_3, window_bounds = array<i64: 128, 128>}, {pipeline_mode = #tpu.pipeline_mode<synchronous>, transform_indices = @transform_4, window_bounds = array<i64: 1, 128>}, {pipeline_mode = #tpu.pipeline_mode<synchronous>, transform_indices = @transform_5, window_bounds = array<i64: 128, 128>}, {pipeline_mode = #tpu.pipeline_mode<synchronous>, transform_indices = @transform_6, window_bounds = array<i64: 1, 128>}, {pipeline_mode = #tpu.pipeline_mode<synchronous>, transform_indices = @transform_7, window_bounds = array<i64: 128, 128>}, {pipeline_mode = #tpu.pipeline_mode<synchronous>, transform_indices = @transform_8, window_bounds = array<i64: 1, 128>}, {pipeline_mode = #tpu.pipeline_mode<synchronous>, transform_indices = @transform_9, window_bounds = array<i64: 1, 128>}, {transform_indices = @transform_10, window_bounds = array<i64: 1, 8, 128>}]} {
    %c0 = arith.constant 0 : index
    %c0_0 = arith.constant 0 : index
    %0 = vector.load %arg4[%c0, %c0_0] : memref<128x128xbf16, #tpu.memory_space<vmem>>, vector<128x128xbf16>
    %c0_1 = arith.constant 0 : index
    %c0_2 = arith.constant 0 : index
    %1 = vector.load %arg6[%c0_1, %c0_2] : memref<128x128xbf16, #tpu.memory_space<vmem>>, vector<128x128xbf16>
    %c0_3 = arith.constant 0 : index
    %c0_4 = arith.constant 0 : index
    %2 = vector.load %arg8[%c0_3, %c0_4] : memref<128x128xbf16, #tpu.memory_space<vmem>>, vector<128x128xbf16>
    %c0_5 = arith.constant 0 : index
    %c0_6 = arith.constant 0 : index
    %3 = vector.load %arg5[%c0_5, %c0_6] : memref<1x128xf32, #tpu.memory_space<vmem>>, vector<1x128xf32>
    %c0_7 = arith.constant 0 : index
    %c0_8 = arith.constant 0 : index
    %4 = vector.load %arg7[%c0_7, %c0_8] : memref<1x128xf32, #tpu.memory_space<vmem>>, vector<1x128xf32>
    %c0_9 = arith.constant 0 : index
    %c0_10 = arith.constant 0 : index
    %5 = vector.load %arg9[%c0_9, %c0_10] : memref<1x128xf32, #tpu.memory_space<vmem>>, vector<1x128xf32>
    %c0_11 = arith.constant 0 : index
    %c0_12 = arith.constant 0 : index
    %6 = vector.load %arg2[%c0_11, %c0_12] : memref<16x128xbf16, #tpu.memory_space<vmem>>, vector<16x128xbf16>
    %cst = arith.constant dense<0.000000e+00> : vector<16x128xf32>
    %7 = tpu.matmul %6, %0, %cst {dimension_numbers = #tpu.dot_dimension_numbers<[1], [0], [0], [1], [0, 0, 1, 1], [], []>} : vector<16x128xbf16>, vector<128x128xbf16>, vector<16x128xf32> -> vector<16x128xf32>
    %8 = vector.broadcast %3 : vector<1x128xf32> to vector<16x128xf32>
    %9 = arith.addf %7, %8 : vector<16x128xf32>
    %cst_13 = arith.constant 0.000000e+00 : f32
    %10 = vector.broadcast %cst_13 : f32 to vector<16x128xf32>
    %11 = arith.maximumf %9, %10 : vector<16x128xf32>
    %cst_14 = arith.constant 0.000000e+00 : f32
    %12 = vector.broadcast %cst_14 : f32 to vector<16x128xf32>
    %13 = arith.cmpf ogt, %11, %12 : vector<16x128xf32>
    %14 = arith.truncf %11 : vector<16x128xf32> to vector<16x128xbf16>
    %cst_15 = arith.constant dense<0.000000e+00> : vector<16x128xf32>
    %15 = tpu.matmul %14, %1, %cst_15 {dimension_numbers = #tpu.dot_dimension_numbers<[1], [0], [0], [1], [0, 0, 1, 1], [], []>} : vector<16x128xbf16>, vector<128x128xbf16>, vector<16x128xf32> -> vector<16x128xf32>
    %16 = vector.broadcast %4 : vector<1x128xf32> to vector<16x128xf32>
    %17 = arith.addf %15, %16 : vector<16x128xf32>
    %cst_16 = arith.constant 0.000000e+00 : f32
    %18 = vector.broadcast %cst_16 : f32 to vector<16x128xf32>
    %19 = arith.maximumf %17, %18 : vector<16x128xf32>
    %cst_17 = arith.constant 0.000000e+00 : f32
    %20 = vector.broadcast %cst_17 : f32 to vector<16x128xf32>
    %21 = arith.cmpf ogt, %19, %20 : vector<16x128xf32>
    %22 = arith.truncf %19 : vector<16x128xf32> to vector<16x128xbf16>
    %cst_18 = arith.constant dense<0.000000e+00> : vector<16x128xf32>
    %23 = tpu.matmul %22, %2, %cst_18 {dimension_numbers = #tpu.dot_dimension_numbers<[1], [0], [0], [1], [0, 0, 1, 1], [], []>} : vector<16x128xbf16>, vector<128x128xbf16>, vector<16x128xf32> -> vector<16x128xf32>
    %24 = vector.broadcast %5 : vector<1x128xf32> to vector<16x128xf32>
    %25 = arith.addf %23, %24 : vector<16x128xf32>
    %c0_19 = arith.constant 0 : index
    %c0_20 = arith.constant 0 : index
    %26 = vector.load %arg10[%c0_19, %c0_20] : memref<1x128xf32, #tpu.memory_space<vmem>>, vector<1x128xf32>
    %cst_21 = arith.constant 0.000000e+00 : f32
    %27 = vector.shape_cast %26 : vector<1x128xf32> to vector<1x128xf32>
    %28 = vector.broadcast %27 : vector<1x128xf32> to vector<16x128xf32>
    %29 = vector.broadcast %cst_21 : f32 to vector<16x128xf32>
    %30 = arith.select %21, %28, %29 : vector<16x128xi1>, vector<16x128xf32>
    %31 = arith.truncf %30 : vector<16x128xf32> to vector<16x128xbf16>
    %cst_22 = arith.constant dense<0.000000e+00> : vector<16x128xf32>
    %32 = tpu.matmul %31, %1, %cst_22 {dimension_numbers = #tpu.dot_dimension_numbers<[1], [1], [0], [0], [0, 0, 1, 0], [], []>} : vector<16x128xbf16>, vector<128x128xbf16>, vector<16x128xf32> -> vector<16x128xf32>
    %cst_23 = arith.constant 0.000000e+00 : f32
    %33 = vector.broadcast %cst_23 : f32 to vector<16x128xf32>
    %34 = arith.select %13, %32, %33 : vector<16x128xi1>, vector<16x128xf32>
    %35 = arith.truncf %34 : vector<16x128xf32> to vector<16x128xbf16>
    %cst_24 = arith.constant dense<0.000000e+00> : vector<16x128xf32>
    %36 = tpu.matmul %35, %0, %cst_24 {dimension_numbers = #tpu.dot_dimension_numbers<[1], [1], [0], [0], [0, 0, 1, 0], [], []>} : vector<16x128xbf16>, vector<128x128xbf16>, vector<16x128xf32> -> vector<16x128xf32>
    %c0_25 = arith.constant 0 : index
    %c0_26 = arith.constant 0 : index
    %37 = vector.load %arg3[%c0_25, %c0_26] : memref<16x128xbf16, #tpu.memory_space<vmem>>, vector<16x128xbf16>
    %cst_27 = arith.constant dense<0.000000e+00> : vector<16x128xf32>
    %38 = tpu.matmul %37, %0, %cst_27 {dimension_numbers = #tpu.dot_dimension_numbers<[1], [0], [0], [1], [0, 0, 1, 1], [], []>} : vector<16x128xbf16>, vector<128x128xbf16>, vector<16x128xf32> -> vector<16x128xf32>
    %39 = vector.broadcast %3 : vector<1x128xf32> to vector<16x128xf32>
    %40 = arith.addf %38, %39 : vector<16x128xf32>
    %cst_28 = arith.constant 0.000000e+00 : f32
    %41 = vector.broadcast %cst_28 : f32 to vector<16x128xf32>
    %42 = arith.maximumf %40, %41 : vector<16x128xf32>
    %43 = arith.truncf %42 : vector<16x128xf32> to vector<16x128xbf16>
    %cst_29 = arith.constant dense<0.000000e+00> : vector<16x128xf32>
    %44 = tpu.matmul %43, %1, %cst_29 {dimension_numbers = #tpu.dot_dimension_numbers<[1], [0], [0], [1], [0, 0, 1, 1], [], []>} : vector<16x128xbf16>, vector<128x128xbf16>, vector<16x128xf32> -> vector<16x128xf32>
    %45 = vector.broadcast %4 : vector<1x128xf32> to vector<16x128xf32>
    %46 = arith.addf %44, %45 : vector<16x128xf32>
    %cst_30 = arith.constant 0.000000e+00 : f32
    %47 = vector.broadcast %cst_30 : f32 to vector<16x128xf32>
    %48 = arith.maximumf %46, %47 : vector<16x128xf32>
    %49 = arith.truncf %48 : vector<16x128xf32> to vector<16x128xbf16>
    %cst_31 = arith.constant dense<0.000000e+00> : vector<16x128xf32>
    %50 = tpu.matmul %49, %2, %cst_31 {dimension_numbers = #tpu.dot_dimension_numbers<[1], [0], [0], [1], [0, 0, 1, 1], [], []>} : vector<16x128xbf16>, vector<128x128xbf16>, vector<16x128xf32> -> vector<16x128xf32>
    %51 = vector.broadcast %5 : vector<1x128xf32> to vector<16x128xf32>
    %52 = arith.addf %50, %51 : vector<16x128xf32>
    %c0_32 = arith.constant 0 : index
    %53 = memref.load %arg1[%c0_32] : memref<2xf32, #tpu.memory_space<smem>>
    %c1 = arith.constant 1 : index
    %54 = memref.load %arg1[%c1] : memref<2xf32, #tpu.memory_space<smem>>
    %55 = tpu.iota {dimensions = array<i32: 0>} : vector<16x1xi32>
    %c16_i32 = arith.constant 16 : i32
    %56 = arith.muli %arg0, %c16_i32 : i32
    %57 = vector.broadcast %56 : i32 to vector<16x1xi32>
    %58 = arith.addi %55, %57 : vector<16x1xi32>
    %c2_i32 = arith.constant 2 : i32
    %59 = vector.broadcast %c2_i32 : i32 to vector<16x1xi32>
    %60 = arith.cmpi slt, %58, %59 : vector<16x1xi32>
    %61 = arith.extui %60 : vector<16x1xi1> to vector<16x1xi32>
    %62 = arith.sitofp %61 : vector<16x1xi32> to vector<16x1xf32>
    %63 = vector.broadcast %53 : f32 to vector<16x128xf32>
    %64 = arith.mulf %63, %36 : vector<16x128xf32>
    %65 = vector.broadcast %54 : f32 to vector<16x128xf32>
    %66 = arith.mulf %65, %25 : vector<16x128xf32>
    %67 = arith.addf %64, %66 : vector<16x128xf32>
    %68 = vector.broadcast %62 : vector<16x1xf32> to vector<16x128xf32>
    %69 = arith.mulf %67, %68 : vector<16x128xf32>
    %70 = vector.broadcast %62 : vector<16x1xf32> to vector<16x128xf32>
    %71 = arith.mulf %52, %70 : vector<16x128xf32>
    %72 = arith.mulf %69, %69 : vector<16x128xf32>
    %73 = vector.shape_cast %72 : vector<16x128xf32> to vector<1x16x128xf32>
    %cst_33 = arith.constant dense<0.000000e+00> : vector<1xf32>
    %74 = vector.multi_reduction <add>, %73, %cst_33 [1, 2] : vector<1x16x128xf32> to vector<1xf32>
    %75 = vector.shape_cast %74 : vector<1xf32> to vector<1x1x1xf32>
    %76 = vector.extract %75[0, 0, 0] : f32 from vector<1x1x1xf32>
    %77 = arith.mulf %71, %71 : vector<16x128xf32>
    %78 = vector.shape_cast %77 : vector<16x128xf32> to vector<1x16x128xf32>
    %cst_34 = arith.constant dense<0.000000e+00> : vector<1xf32>
    %79 = vector.multi_reduction <add>, %78, %cst_34 [1, 2] : vector<1x16x128xf32> to vector<1xf32>
    %80 = vector.shape_cast %79 : vector<1xf32> to vector<1x1x1xf32>
    %81 = vector.extract %80[0, 0, 0] : f32 from vector<1x1x1xf32>
    %82 = arith.addf %76, %81 : f32
    %83 = vector.broadcast %82 : f32 to vector<1x8x128xf32>
    %c0_35 = arith.constant 0 : index
    %c0_36 = arith.constant 0 : index
    %c0_37 = arith.constant 0 : index
    %84 = vector.load %arg11[%c0_35, %c0_36, %c0_37] : memref<1x8x128xf32, #tpu.memory_space<vmem>>, vector<1x8x128xf32>
    tpu.vector_store %arg11[%c0_35, %c0_36, %c0_37], %83 {strides = array<i32>} : memref<1x8x128xf32, #tpu.memory_space<vmem>>, vector<1x8x128xf32>,
    return
  }
  func.func @transform_0(%arg0: i32) -> i32 {
    %c0_i32 = arith.constant 0 : i32
    %c0_i32_0 = arith.constant 0 : i32
    return %c0_i32 : i32
  }
  func.func @transform_1(%arg0: i32) -> (i32, i32) {
    %c0_i32 = arith.constant 0 : i32
    %c0_i32_0 = arith.constant 0 : i32
    return %arg0, %c0_i32 : i32, i32
  }
  func.func @transform_2(%arg0: i32) -> (i32, i32) {
    %c0_i32 = arith.constant 0 : i32
    %c0_i32_0 = arith.constant 0 : i32
    return %arg0, %c0_i32 : i32, i32
  }
  func.func @transform_3(%arg0: i32) -> (i32, i32) {
    %c0_i32 = arith.constant 0 : i32
    %c0_i32_0 = arith.constant 0 : i32
    %c0_i32_1 = arith.constant 0 : i32
    return %c0_i32, %c0_i32_0 : i32, i32
  }
  func.func @transform_4(%arg0: i32) -> (i32, i32) {
    %c0_i32 = arith.constant 0 : i32
    %c0_i32_0 = arith.constant 0 : i32
    %c0_i32_1 = arith.constant 0 : i32
    return %c0_i32, %c0_i32_0 : i32, i32
  }
  func.func @transform_5(%arg0: i32) -> (i32, i32) {
    %c0_i32 = arith.constant 0 : i32
    %c0_i32_0 = arith.constant 0 : i32
    %c0_i32_1 = arith.constant 0 : i32
    return %c0_i32, %c0_i32_0 : i32, i32
  }
  func.func @transform_6(%arg0: i32) -> (i32, i32) {
    %c0_i32 = arith.constant 0 : i32
    %c0_i32_0 = arith.constant 0 : i32
    %c0_i32_1 = arith.constant 0 : i32
    return %c0_i32, %c0_i32_0 : i32, i32
  }
  func.func @transform_7(%arg0: i32) -> (i32, i32) {
    %c0_i32 = arith.constant 0 : i32
    %c0_i32_0 = arith.constant 0 : i32
    %c0_i32_1 = arith.constant 0 : i32
    return %c0_i32, %c0_i32_0 : i32, i32
  }
  func.func @transform_8(%arg0: i32) -> (i32, i32) {
    %c0_i32 = arith.constant 0 : i32
    %c0_i32_0 = arith.constant 0 : i32
    %c0_i32_1 = arith.constant 0 : i32
    return %c0_i32, %c0_i32_0 : i32, i32
  }
  func.func @transform_9(%arg0: i32) -> (i32, i32) {
    %c0_i32 = arith.constant 0 : i32
    %c0_i32_0 = arith.constant 0 : i32
    %c0_i32_1 = arith.constant 0 : i32
    return %c0_i32, %c0_i32_0 : i32, i32
  }
  func.func @transform_10(%arg0: i32) -> (i32, i32, i32) {
    %c0_i32 = arith.constant 0 : i32
    %c0_i32_0 = arith.constant 0 : i32
    %c0_i32_1 = arith.constant 0 : i32
    return %arg0, %c0_i32, %c0_i32_0 : i32, i32, i32
  }
}

</mosaic_0001>

<llo_original>
// kernel: tpu_custom_call.1
$region0: #{tpu_custom_call.1}
  #allocation0 [shape = 'u32[]', space=smem, size = 0x4, offset = 0x4, fixed_abs, tag = 'smem constant byte address 0x4 - core index']
  #allocation1 [shape = 'u32[72,128]{1,0:T(1,128)}', space=vmem, size = 0x9000, scoped, tag = 'internal scratch']
  %s0 = inlined_call_operand.hbm [shape: f32[2], index: 0, kind: input, shape index: {}]
  %s1 = inlined_call_operand.hbm [shape: bf16[16,128], index: 1, kind: input, shape index: {}]
  %s2 = inlined_call_operand.hbm [shape: bf16[16,128], index: 2, kind: input, shape index: {}]
  %s3 = inlined_call_operand.hbm [shape: bf16[128,128], index: 3, kind: input, shape index: {}]
  %s4 = inlined_call_operand.vmem [shape: f32[1,128], index: 4, kind: input, shape index: {}]
  %s5 = inlined_call_operand.hbm [shape: bf16[128,128], index: 5, kind: input, shape index: {}]
  %s6 = inlined_call_operand.vmem [shape: f32[1,128], index: 6, kind: input, shape index: {}]
  %s7 = inlined_call_operand.hbm [shape: bf16[128,128], index: 7, kind: input, shape index: {}]
  %s8 = inlined_call_operand.vmem [shape: f32[1,128], index: 8, kind: input, shape index: {}]
  %s9 = inlined_call_operand.vmem [shape: f32[1,128], index: 9, kind: input, shape index: {}]
  %s10 = inlined_call_operand.hbm [shape: f32[1,8,128], index: 10, kind: output, shape index: {}]
  %s11 = sld [smem:[#allocation0]]
  $region74: #{tpu_custom_call.1} parent=0
    _
  %s13 = ssub.s32 1, %s11
  %s14 = scalar_select 0, %s13, %s11
  $region1: #{tpu_custom_call.1} parent=0
    #allocation2 [shape = 'u8[512]{0}', space=smem, size = 0x200, scoped, tag = 'input window, operand 0, single buffered']
    #allocation3 [shape = 's32[1]{0}', space=sflag, size = 0x4, scoped, tag = 'scoped memory for tpu_custom_call.1']
    #allocation4 [shape = 's32[1]{0}', space=sflag, size = 0x4, scoped, tag = 'scoped memory for tpu_custom_call.1']
    #allocation5 [shape = 's32[1]{0}', space=sflag, size = 0x4, scoped, tag = 'scoped memory for tpu_custom_call.1']
    #allocation6 [shape = 'u8[4096]{0}', space=vmem, size = 0x1000, scoped, tag = 'input window, operand 1, single buffered']
    #allocation7 [shape = 'u8[4096]{0}', space=vmem, size = 0x1000, scoped, tag = 'input window, operand 2, single buffered']
    #allocation8 [shape = 's32[1]{0}', space=sflag, size = 0x4, scoped, tag = 'scoped memory for tpu_custom_call.1']
    #allocation9 [shape = 'u8[32768]{0}', space=vmem, size = 0x8000, scoped, tag = 'input window, operand 3, single buffered']
    #allocation10 [shape = 'u8[32768]{0}', space=vmem, size = 0x8000, scoped, tag = 'input window, operand 5, single buffered']
    #allocation11 [shape = 's32[1]{0}', space=sflag, size = 0x4, scoped, tag = 'scoped memory for tpu_custom_call.1']
    #allocation12 [shape = 'u8[32768]{0}', space=vmem, size = 0x8000, scoped, tag = 'input window, operand 7, single buffered']
    #allocation13 [shape = 'u8[4096]{0}', space=vmem, size = 0x1000, scoped, tag = 'output window, operand 0, single buffered']
    %15 = vsyncpa [#allocation5], 0
    %16 = vsyncpa [#allocation3], 0
    %17 = vsyncpa [#allocation8], 0
    %18 = vsyncpa [#allocation11], 0
    %19 = vsyncpa [#allocation4], 0
    // Predicated region
    $region2: #{tpu_custom_call.1} parent=1 // pred_check
      _
    $region3: #{tpu_custom_call.1} parent=1 // pred_check_branch
      %21 = sbr.rel (0) target = $region5
    $region4: #{tpu_custom_call.1} parent=1 // pred_region
      %23 = vsyncadd [#allocation5], 0
      %s25 = sshll.u32 %s0, 4
      %s26 = int_to_ptr.hbm [resolvable:$true] %s25
      %28 = dma.hbm_to_smem %s26, 16, [#allocation2], [#allocation5]
    $region5: #{tpu_custom_call.1} parent=1 // pred_fallthru
      _
    // Predicated region
    $region6: #{tpu_custom_call.1} parent=1 // pred_check
      _
    $region7: #{tpu_custom_call.1} parent=1 // pred_check_branch
      %30 = sbr.rel (0) target = $region9
    $region8: #{tpu_custom_call.1} parent=1 // pred_region
      %32 = vsyncadd [#allocation3], 0
      %s33 = sshll.u32 %s1, 4
      %s34 = int_to_ptr.hbm [resolvable:$true] %s33
      %s35 = sshll.u32 [#allocation6], 4
      %s36 = int_to_ptr.vmem [resolvable:$true] %s35
      %41 = dma.hbm_to_vmem [thread:$0]  %s34, 128, %s36, [#allocation3], 64, 64, 4
    $region9: #{tpu_custom_call.1} parent=1 // pred_fallthru
      _
    // Predicated region
    $region10: #{tpu_custom_call.1} parent=1 // pred_check
      _
    $region11: #{tpu_custom_call.1} parent=1 // pred_check_branch
      %43 = sbr.rel (0) target = $region13
    $region12: #{tpu_custom_call.1} parent=1 // pred_region
      %45 = vsyncadd [#allocation8], 0
      %s46 = sshll.u32 %s2, 4
      %s47 = int_to_ptr.hbm [resolvable:$true] %s46
      %s48 = sshll.u32 [#allocation7], 4
      %s49 = int_to_ptr.vmem [resolvable:$true] %s48
      %54 = dma.hbm_to_vmem [thread:$0]  %s47, 128, %s49, [#allocation8], 64, 64, 4
    $region13: #{tpu_custom_call.1} parent=1 // pred_fallthru
      _
    // Predicated region
    $region14: #{tpu_custom_call.1} parent=1 // pred_check
      _
    $region15: #{tpu_custom_call.1} parent=1 // pred_check_branch
      %56 = sbr.rel (0) target = $region17
    $region16: #{tpu_custom_call.1} parent=1 // pred_region
      %58 = vsyncadd [#allocation8], 0
      %s59 = sshll.u32 %s3, 4
      %s60 = int_to_ptr.hbm [resolvable:$true] %s59
      %s61 = sshll.u32 [#allocation9], 4
      %s62 = int_to_ptr.vmem [resolvable:$true] %s61
      %67 = dma.hbm_to_vmem [thread:$0]  %s60, 1024, %s62, [#allocation8], 64, 64, 4
    $region17: #{tpu_custom_call.1} parent=1 // pred_fallthru
      _
    // Predicated region
    $region18: #{tpu_custom_call.1} parent=1 // pred_check
      _
    $region19: #{tpu_custom_call.1} parent=1 // pred_check_branch
      %69 = sbr.rel (0) target = $region21
    $region20: #{tpu_custom_call.1} parent=1 // pred_region
      _
    $region21: #{tpu_custom_call.1} parent=1 // pred_fallthru
      _
    // Predicated region
    $region22: #{tpu_custom_call.1} parent=1 // pred_check
      _
    $region23: #{tpu_custom_call.1} parent=1 // pred_check_branch
      %71 = sbr.rel (0) target = $region25
    $region24: #{tpu_custom_call.1} parent=1 // pred_region
      %73 = vsyncadd [#allocation11], 0
      %s74 = sshll.u32 %s5, 4
      %s75 = int_to_ptr.hbm [resolvable:$true] %s74
      %s76 = sshll.u32 [#allocation10], 4
      %s77 = int_to_ptr.vmem [resolvable:$true] %s76
      %82 = dma.hbm_to_vmem [thread:$0]  %s75, 1024, %s77, [#allocation11], 64, 64, 4
    $region25: #{tpu_custom_call.1} parent=1 // pred_fallthru
      _
    // Predicated region
    $region26: #{tpu_custom_call.1} parent=1 // pred_check
      _
    $region27: #{tpu_custom_call.1} parent=1 // pred_check_branch
      %84 = sbr.rel (0) target = $region29
    $region28: #{tpu_custom_call.1} parent=1 // pred_region
      _
    $region29: #{tpu_custom_call.1} parent=1 // pred_fallthru
      _
    // Predicated region
    $region30: #{tpu_custom_call.1} parent=1 // pred_check
      _
    $region31: #{tpu_custom_call.1} parent=1 // pred_check_branch
      %86 = sbr.rel (0) target = $region33
    $region32: #{tpu_custom_call.1} parent=1 // pred_region
      %88 = vsyncadd [#allocation11], 0
      %s89 = sshll.u32 %s7, 4
      %s90 = int_to_ptr.hbm [resolvable:$true] %s89
      %s91 = sshll.u32 [#allocation12], 4
      %s92 = int_to_ptr.vmem [resolvable:$true] %s91
      %97 = dma.hbm_to_vmem [thread:$0]  %s90, 1024, %s92, [#allocation11], 64, 64, 4
    $region33: #{tpu_custom_call.1} parent=1 // pred_fallthru
      _
    // Predicated region
    $region34: #{tpu_custom_call.1} parent=1 // pred_check
      _
    $region35: #{tpu_custom_call.1} parent=1 // pred_check_branch
      %99 = sbr.rel (0) target = $region37
    $region36: #{tpu_custom_call.1} parent=1 // pred_region
      _
    $region37: #{tpu_custom_call.1} parent=1 // pred_fallthru
      _
    // Predicated region
    $region38: #{tpu_custom_call.1} parent=1 // pred_check
      _
    $region39: #{tpu_custom_call.1} parent=1 // pred_check_branch
      %101 = sbr.rel (0) target = $region41
    $region40: #{tpu_custom_call.1} parent=1 // pred_region
      _
    $region41: #{tpu_custom_call.1} parent=1 // pred_fallthru
      _
    // Predicated region
    $region42: #{tpu_custom_call.1} parent=1 // pred_check
      _
    $region43: #{tpu_custom_call.1} parent=1 // pred_check_branch
      %103 = sbr.rel (0) target = $region45
    $region44: #{tpu_custom_call.1} parent=1 // pred_region
      %105 = dma.done [#allocation5], 16
    $region45: #{tpu_custom_call.1} parent=1 // pred_fallthru
      _
    // Predicated region
    $region46: #{tpu_custom_call.1} parent=1 // pred_check
      _
    $region47: #{tpu_custom_call.1} parent=1 // pred_check_branch
      %107 = sbr.rel (0) target = $region49
    $region48: #{tpu_custom_call.1} parent=1 // pred_region
      %109 = dma.done [#allocation3], 128
    $region49: #{tpu_custom_call.1} parent=1 // pred_fallthru
      _
    // Predicated region
    $region50: #{tpu_custom_call.1} parent=1 // pred_check
      _
    $region51: #{tpu_custom_call.1} parent=1 // pred_check_branch
      %111 = sbr.rel (0) target = $region53
    $region52: #{tpu_custom_call.1} parent=1 // pred_region
      %113 = dma.done [#allocation8], 128
    $region53: #{tpu_custom_call.1} parent=1 // pred_fallthru
      _
    // Predicated region
    $region54: #{tpu_custom_call.1} parent=1 // pred_check
      _
    $region55: #{tpu_custom_call.1} parent=1 // pred_check_branch
      %115 = sbr.rel (0) target = $region57
    $region56: #{tpu_custom_call.1} parent=1 // pred_region
      %117 = dma.done [#allocation8], 1024
    $region57: #{tpu_custom_call.1} parent=1 // pred_fallthru
      _
    // Predicated region
    $region58: #{tpu_custom_call.1} parent=1 // pred_check
      _
    $region59: #{tpu_custom_call.1} parent=1 // pred_check_branch
      %119 = sbr.rel (0) target = $region61
    $region60: #{tpu_custom_call.1} parent=1 // pred_region
      %121 = dma.done [#allocation11], 1024
    $region61: #{tpu_custom_call.1} parent=1 // pred_fallthru
      _
    // Predicated region
    $region62: #{tpu_custom_call.1} parent=1 // pred_check
      _
    $region63: #{tpu_custom_call.1} parent=1 // pred_check_branch
      %123 = sbr.rel (0) target = $region65
    $region64: #{tpu_custom_call.1} parent=1 // pred_region
      %125 = dma.done [#allocation11], 1024
    $region65: #{tpu_custom_call.1} parent=1 // pred_fallthru
      _
    %126 = sfence
    %v127 = vld [vmem:[#allocation9] sm:$0xf]
    %v128 = vld [vmem:[#allocation9 + $0x4] sm:$0xf]
    %v129 = vld [vmem:[#allocation9 + $0x8] sm:$0xf]
    %v130 = vld [vmem:[#allocation9 + $0xc] sm:$0xf]
    %v131 = vld [vmem:[#allocation9 + $0x10] sm:$0xf]
    %v132 = vld [vmem:[#allocation9 + $0x14] sm:$0xf]
    %v133 = vld [vmem:[#allocation9 + $0x18] sm:$0xf]
    %v134 = vld [vmem:[#allocation9 + $0x1c] sm:$0xf]
    %v135 = vld [vmem:[#allocation9 + $0x20] sm:$0xf]
    %v136 = vld [vmem:[#allocation9 + $0x24] sm:$0xf]
    %v137 = vld [vmem:[#allocation9 + $0x28] sm:$0xf]
    %v138 = vld [vmem:[#allocation9 + $0x2c] sm:$0xf]
    %v139 = vld [vmem:[#allocation9 + $0x30] sm:$0xf]
    %v140 = vld [vmem:[#allocation9 + $0x34] sm:$0xf]
    %v141 = vld [vmem:[#allocation9 + $0x38] sm:$0xf]
    %v142 = vld [vmem:[#allocation9 + $0x3c] sm:$0xf]
    %v143 = vld [vmem:[#allocation10] sm:$0xf]
    %v144 = vld [vmem:[#allocation10 + $0x4] sm:$0xf]
    %v145 = vld [vmem:[#allocation10 + $0x8] sm:$0xf]
    %v146 = vld [vmem:[#allocation10 + $0xc] sm:$0xf]
    %v147 = vld [vmem:[#allocation10 + $0x10] sm:$0xf]
    %v148 = vld [vmem:[#allocation10 + $0x14] sm:$0xf]
    %v149 = vld [vmem:[#allocation10 + $0x18] sm:$0xf]
    %v150 = vld [vmem:[#allocation10 + $0x1c] sm:$0xf]
    %v151 = vld [vmem:[#allocation10 + $0x20] sm:$0xf]
    %v152 = vld [vmem:[#allocation10 + $0x24] sm:$0xf]
    %v153 = vld [vmem:[#allocation10 + $0x28] sm:$0xf]
    %v154 = vld [vmem:[#allocation10 + $0x2c] sm:$0xf]
    %v155 = vld [vmem:[#allocation10 + $0x30] sm:$0xf]
    %v156 = vld [vmem:[#allocation10 + $0x34] sm:$0xf]
    %v157 = vld [vmem:[#allocation10 + $0x38] sm:$0xf]
    %v158 = vld [vmem:[#allocation10 + $0x3c] sm:$0xf]
    %v159 = vld [vmem:[#allocation12] sm:$0xf]
    %v160 = vld [vmem:[#allocation12 + $0x4] sm:$0xf]
    %v161 = vld [vmem:[#allocation12 + $0x8] sm:$0xf]
    %v162 = vld [vmem:[#allocation12 + $0xc] sm:$0xf]
    %v163 = vld [vmem:[#allocation12 + $0x10] sm:$0xf]
    %v164 = vld [vmem:[#allocation12 + $0x14] sm:$0xf]
    %v165 = vld [vmem:[#allocation12 + $0x18] sm:$0xf]
    %v166 = vld [vmem:[#allocation12 + $0x1c] sm:$0xf]
    %v167 = vld [vmem:[#allocation12 + $0x20] sm:$0xf]
    %v168 = vld [vmem:[#allocation12 + $0x24] sm:$0xf]
    %v169 = vld [vmem:[#allocation12 + $0x28] sm:$0xf]
    %v170 = vld [vmem:[#allocation12 + $0x2c] sm:$0xf]
    %v171 = vld [vmem:[#allocation12 + $0x30] sm:$0xf]
    %v172 = vld [vmem:[#allocation12 + $0x34] sm:$0xf]
    %v173 = vld [vmem:[#allocation12 + $0x38] sm:$0xf]
    %v174 = vld [vmem:[#allocation12 + $0x3c] sm:$0xf]
    %v175 = vld [vmem:[%s4] sm:$0x1]
    %v176 = vld [vmem:[%s6] sm:$0x1]
    %v177 = vld [vmem:[%s8] sm:$0x1]
    %v178 = vld [vmem:[#allocation6] sm:$0xf]
    %v179 = vld [vmem:[#allocation6 + $0x4] sm:$0xf]
    %v181 = vperm.slane %v175, 0
    %v185 = vunpack.c.l.b16 %v178
    %v186 = vunpack.c.l.b16 %v179
    %v187 = vpack.c.b16 %v186, %v185
    %v205 = vunpack.c.l.b16 %v127
    %v206 = vunpack.c.l.b16 %v128
    %v207 = vunpack.c.l.b16 %v129
    %v208 = vunpack.c.l.b16 %v130
    %v209 = vunpack.c.l.b16 %v131
    %v210 = vunpack.c.l.b16 %v132
    %v211 = vunpack.c.l.b16 %v133
    %v212 = vunpack.c.l.b16 %v134
    %v213 = vunpack.c.l.b16 %v135
    %v214 = vunpack.c.l.b16 %v136
    %v215 = vunpack.c.l.b16 %v137
    %v216 = vunpack.c.l.b16 %v138
    %v217 = vunpack.c.l.b16 %v139
    %v218 = vunpack.c.l.b16 %v140
    %v219 = vunpack.c.l.b16 %v141
    %v220 = vunpack.c.l.b16 %v142
    %v221 = vpack.c.b16 %v206, %v205
    %v222 = vpack.c.b16 %v208, %v207
    %v223 = vpack.c.b16 %v210, %v209
    %v224 = vpack.c.b16 %v212, %v211
    %v225 = vpack.c.b16 %v214, %v213
    %v226 = vpack.c.b16 %v216, %v215
    %v227 = vpack.c.b16 %v218, %v217
    %v228 = vpack.c.b16 %v220, %v219
    %237 = vmatpush.bf16.msra.mxu0 %v228
    %238 = vmatpush.bf16.msra.mxu0 %v227
    %239 = vmatpush.bf16.msra.mxu0 %v226
    %240 = vmatpush.bf16.msra.mxu0 %v225
    %241 = vmatpush.bf16.msra.mxu0 %v224
    %242 = vmatpush.bf16.msra.mxu0 %v223
    %243 = vmatpush.bf16.msra.mxu0 %v222
    %244 = vmatpush.bf16.msra.mxu0 %v221
    %245 = vmatmul.bf16.gmra.mxu0 %v187
    %v246 = vpop.f32.mrf.mxu0
    %v247 = vadd.f32 %v181, %v246
    %v248 = vpop.f32.mrf.mxu0
    %v249 = vadd.f32 %v181, %v248
    %250 = vdwg.mxu0
    %v251 = vmax.f32 %v247, 0.0
    %v252 = vmax.f32 %v249, 0.0
    %vm253 = vcmp.gt.f32.partialorder %v251, 0.0
    %vm254 = vcmp.gt.f32.partialorder %v252, 0.0
    %v255 = vpack.c.bf16 %v252, %v251
    %v257 = vperm.slane %v176, 0
    %v275 = vunpack.c.l.b16 %v143
    %v276 = vunpack.c.l.b16 %v144
    %v277 = vunpack.c.l.b16 %v145
    %v278 = vunpack.c.l.b16 %v146
    %v279 = vunpack.c.l.b16 %v147
    %v280 = vunpack.c.l.b16 %v148
    %v281 = vunpack.c.l.b16 %v149
    %v282 = vunpack.c.l.b16 %v150
    %v283 = vunpack.c.l.b16 %v151
    %v284 = vunpack.c.l.b16 %v152
    %v285 = vunpack.c.l.b16 %v153
    %v286 = vunpack.c.l.b16 %v154
    %v287 = vunpack.c.l.b16 %v155
    %v288 = vunpack.c.l.b16 %v156
    %v289 = vunpack.c.l.b16 %v157
    %v290 = vunpack.c.l.b16 %v158
    %v291 = vpack.c.b16 %v276, %v275
    %v292 = vpack.c.b16 %v278, %v277
    %v293 = vpack.c.b16 %v280, %v279
    %v294 = vpack.c.b16 %v282, %v281
    %v295 = vpack.c.b16 %v284, %v283
    %v296 = vpack.c.b16 %v286, %v285
    %v297 = vpack.c.b16 %v288, %v287
    %v298 = vpack.c.b16 %v290, %v289
    %307 = vmatpush.bf16.msra.mxu0 %v298
    %308 = vmatpush.bf16.msra.mxu0 %v297
    %309 = vmatpush.bf16.msra.mxu0 %v296
    %310 = vmatpush.bf16.msra.mxu0 %v295
    %311 = vmatpush.bf16.msra.mxu0 %v294
    %312 = vmatpush.bf16.msra.mxu0 %v293
    %313 = vmatpush.bf16.msra.mxu0 %v292
    %314 = vmatpush.bf16.msra.mxu0 %v291
    %315 = vmatmul.bf16.gmra.mxu0 %v255
    %v316 = vpop.f32.mrf.mxu0
    %v317 = vadd.f32 %v257, %v316
    %v318 = vpop.f32.mrf.mxu0
    %v319 = vadd.f32 %v257, %v318
    %320 = vdwg.mxu0
    %v321 = vmax.f32 %v317, 0.0
    %v322 = vmax.f32 %v319, 0.0
    %vm323 = vcmp.gt.f32.partialorder %v321, 0.0
    %vm324 = vcmp.gt.f32.partialorder %v322, 0.0
    %v325 = vpack.c.bf16 %v322, %v321
    %v327 = vperm.slane %v177, 0
    %v345 = vunpack.c.l.b16 %v159
    %v346 = vunpack.c.l.b16 %v160
    %v347 = vunpack.c.l.b16 %v161
    %v348 = vunpack.c.l.b16 %v162
    %v349 = vunpack.c.l.b16 %v163
    %v350 = vunpack.c.l.b16 %v164
    %v351 = vunpack.c.l.b16 %v165
    %v352 = vunpack.c.l.b16 %v166
    %v353 = vunpack.c.l.b16 %v167
    %v354 = vunpack.c.l.b16 %v168
    %v355 = vunpack.c.l.b16 %v169
    %v356 = vunpack.c.l.b16 %v170
    %v357 = vunpack.c.l.b16 %v171
    %v358 = vunpack.c.l.b16 %v172
    %v359 = vunpack.c.l.b16 %v173
    %v360 = vunpack.c.l.b16 %v174
    %v361 = vpack.c.b16 %v346, %v345
    %v362 = vpack.c.b16 %v348, %v347
    %v363 = vpack.c.b16 %v350, %v349
    %v364 = vpack.c.b16 %v352, %v351
    %v365 = vpack.c.b16 %v354, %v353
    %v366 = vpack.c.b16 %v356, %v355
    %v367 = vpack.c.b16 %v358, %v357
    %v368 = vpack.c.b16 %v360, %v359
    %377 = vmatpush.bf16.msra.mxu0 %v368
    %378 = vmatpush.bf16.msra.mxu0 %v367
    %379 = vmatpush.bf16.msra.mxu0 %v366
    %380 = vmatpush.bf16.msra.mxu0 %v365
    %381 = vmatpush.bf16.msra.mxu0 %v364
    %382 = vmatpush.bf16.msra.mxu0 %v363
    %383 = vmatpush.bf16.msra.mxu0 %v362
    %384 = vmatpush.bf16.msra.mxu0 %v361
    %385 = vmatmul.bf16.gmra.mxu0 %v325
    %v386 = vpop.f32.mrf.mxu0
    %v387 = vadd.f32 %v327, %v386
    %v388 = vpop.f32.mrf.mxu0
    %v389 = vadd.f32 %v327, %v388
    %390 = vdwg.mxu0
    %v391 = vld [vmem:[%s9] sm:$0x1]
    %v393 = vperm.slane %v391, 0
    %v395 = vsel %vm323, %v393, 0.0
    %v396 = vsel %vm324, %v393, 0.0
    %v397 = vpack.c.bf16 %v396, %v395
    %398 = vmatpush.bf16.xpose.msra.mxu0 %v298
    %399 = vmatpush.bf16.xpose.msra.mxu0 %v297
    %400 = vmatpush.bf16.xpose.msra.mxu0 %v296
    %401 = vmatpush.bf16.xpose.msra.mxu0 %v295
    %402 = vmatpush.bf16.xpose.msra.mxu0 %v294
    %403 = vmatpush.bf16.xpose.msra.mxu0 %v293
    %404 = vmatpush.bf16.xpose.msra.mxu0 %v292
    %405 = vmatpush.bf16.xpose.msra.mxu0 %v291
    %406 = vmatmul.bf16.gmra.mxu0 %v397
    %v407 = vpop.f32.mrf.mxu0
    %v408 = vadd.f32 0.0, %v407
    %v409 = vpop.f32.mrf.mxu0
    %v410 = vadd.f32 0.0, %v409
    %411 = vdwg.mxu0
    %v412 = vsel %vm253, %v408, 0.0
    %v413 = vsel %vm254, %v410, 0.0
    %v414 = vpack.c.bf16 %v413, %v412
    %415 = vmatpush.bf16.xpose.msra.mxu0 %v228
    %416 = vmatpush.bf16.xpose.msra.mxu0 %v227
    %417 = vmatpush.bf16.xpose.msra.mxu0 %v226
    %418 = vmatpush.bf16.xpose.msra.mxu0 %v225
    %419 = vmatpush.bf16.xpose.msra.mxu0 %v224
    %420 = vmatpush.bf16.xpose.msra.mxu0 %v223
    %421 = vmatpush.bf16.xpose.msra.mxu0 %v222
    %422 = vmatpush.bf16.xpose.msra.mxu0 %v221
    %423 = vmatmul.bf16.gmra.mxu0 %v414
    %v424 = vpop.f32.mrf.mxu0
    %v425 = vadd.f32 0.0, %v424
    %v426 = vpop.f32.mrf.mxu0
    %v427 = vadd.f32 0.0, %v426
    %428 = vdwg.mxu0
    %v429 = vld [vmem:[#allocation7] sm:$0xf]
    %v430 = vld [vmem:[#allocation7 + $0x4] sm:$0xf]
    %v433 = vunpack.c.l.b16 %v429
    %v434 = vunpack.c.l.b16 %v430
    %v435 = vpack.c.b16 %v434, %v433
    %437 = vmatpush.bf16.msra.mxu0 %v228
    %438 = vmatpush.bf16.msra.mxu0 %v227
    %439 = vmatpush.bf16.msra.mxu0 %v226
    %440 = vmatpush.bf16.msra.mxu0 %v225
    %441 = vmatpush.bf16.msra.mxu0 %v224
    %442 = vmatpush.bf16.msra.mxu0 %v223
    %443 = vmatpush.bf16.msra.mxu0 %v222
    %444 = vmatpush.bf16.msra.mxu0 %v221
    %445 = vmatmul.bf16.gmra.mxu0 %v435
    %v446 = vpop.f32.mrf.mxu0
    %v447 = vadd.f32 %v181, %v446
    %v448 = vpop.f32.mrf.mxu0
    %v449 = vadd.f32 %v181, %v448
    %450 = vdwg.mxu0
    %v451 = vmax.f32 %v447, 0.0
    %v452 = vmax.f32 %v449, 0.0
    %v453 = vpack.c.bf16 %v452, %v451
    %454 = vmatpush.bf16.msra.mxu0 %v298
    %455 = vmatpush.bf16.msra.mxu0 %v297
    %456 = vmatpush.bf16.msra.mxu0 %v296
    %457 = vmatpush.bf16.msra.mxu0 %v295
    %458 = vmatpush.bf16.msra.mxu0 %v294
    %459 = vmatpush.bf16.msra.mxu0 %v293
    %460 = vmatpush.bf16.msra.mxu0 %v292
    %461 = vmatpush.bf16.msra.mxu0 %v291
    %462 = vmatmul.bf16.gmra.mxu0 %v453
    %v463 = vpop.f32.mrf.mxu0
    %v464 = vadd.f32 %v257, %v463
    %v465 = vpop.f32.mrf.mxu0
    %v466 = vadd.f32 %v257, %v465
    %467 = vdwg.mxu0
    %v468 = vmax.f32 %v464, 0.0
    %v469 = vmax.f32 %v466, 0.0
    %v470 = vpack.c.bf16 %v469, %v468
    %471 = vmatpush.bf16.msra.mxu0 %v368
    %472 = vmatpush.bf16.msra.mxu0 %v367
    %473 = vmatpush.bf16.msra.mxu0 %v366
    %474 = vmatpush.bf16.msra.mxu0 %v365
    %475 = vmatpush.bf16.msra.mxu0 %v364
    %476 = vmatpush.bf16.msra.mxu0 %v363
    %477 = vmatpush.bf16.msra.mxu0 %v362
    %478 = vmatpush.bf16.msra.mxu0 %v361
    %479 = vmatmul.bf16.gmra.mxu0 %v470
    %v480 = vpop.f32.mrf.mxu0
    %v481 = vadd.f32 %v327, %v480
    %v482 = vpop.f32.mrf.mxu0
    %v483 = vadd.f32 %v327, %v482
    %484 = vdwg.mxu0
    %s485 = sld [smem:[#allocation2]]
    %s486 = sld [smem:[#allocation2 + $0x1]]
    %v487 = vlaneseq
    %v488 = vshrl.u32 %v487, 7
    %v489 = vadd.s32 %v488, 8
    %s490 = smul.u32 0, 16
    %v491 = vstv %s490
    %v492 = vadd.s32 %v488, %v491
    %v493 = vadd.s32 %v489, %v491
    %vm494 = vcmp.lt.s32.totalorder %v492, 2
    %vm495 = vcmp.lt.s32.totalorder %v493, 2
    %v496 = vsel %vm494, 1, 0
    %v497 = vsel %vm495, 1, 0
    %v498 = vcvt.s32.f32 %v496
    %v499 = vcvt.s32.f32 %v497
    %v500 = vstv %s485
    %v501 = vmul.f32 %v500, %v425
    %v502 = vmul.f32 %v500, %v427
    %v503 = vstv %s486
    %v504 = vmul.f32 %v503, %v387
    %v505 = vmul.f32 %v503, %v389
    %v506 = vadd.f32 %v501, %v504
    %v507 = vadd.f32 %v502, %v505
    %v508 = vmul.f32 %v506, %v498
    %v509 = vmul.f32 %v507, %v499
    %v510 = vmul.f32 %v481, %v498
    %v511 = vmul.f32 %v483, %v499
    %v512 = vmul.f32 %v508, %v508
    %v513 = vmul.f32 %v509, %v509
    %v514 = vadd.f32 %v512, %v513
    %515 = vadd.xlane.f32.xlu0 %v514
    %v516 = vpop.xlane.xlu0 %515
    %v517 = vrot.slane %v516, 4
    %v518 = vadd.f32 %v516, %v517
    %v519 = vrot.slane %v518, 2
    %v520 = vadd.f32 %v518, %v519
    %v521 = vrot.slane %v520, 1
    %v522 = vadd.f32 %v520, %v521
    %s523 = vtos %v522
    %v524 = vmul.f32 %v510, %v510
    %v525 = vmul.f32 %v511, %v511
    %v526 = vadd.f32 %v524, %v525
    %527 = vadd.xlane.f32.xlu0 %v526
    %v528 = vpop.xlane.xlu0 %527
    %v529 = vrot.slane %v528, 4
    %v530 = vadd.f32 %v528, %v529
    %v531 = vrot.slane %v530, 2
    %v532 = vadd.f32 %v530, %v531
    %v533 = vrot.slane %v532, 1
    %v534 = vadd.f32 %v532, %v533
    %s535 = vtos %v534
    %s536 = sadd.f32 %s523, %s535
    %v537 = vstv %s536
    %538 = vst [vmem:[#allocation13] sm:$0xff] %v537
    // Predicated region
    $region66: #{tpu_custom_call.1} parent=1 // pred_check
      _
    $region67: #{tpu_custom_call.1} parent=1 // pred_check_branch
      %540 = sbr.rel (0) target = $region69
    $region68: #{tpu_custom_call.1} parent=1 // pred_region
      %542 = vsyncadd [#allocation4], 0
      %s544 = sshll.u32 [#allocation13], 4
      %s545 = int_to_ptr.vmem [resolvable:$true] %s544
      %s546 = sshll.u32 %s10, 4
      %s547 = int_to_ptr.hbm [resolvable:$true] %s546
      %549 = dma.vmem_to_hbm [thread:$0]  %s545, 128, %s547, [#allocation4]
    $region69: #{tpu_custom_call.1} parent=1 // pred_fallthru
      _
    // Predicated region
    $region70: #{tpu_custom_call.1} parent=1 // pred_check
      _
    $region71: #{tpu_custom_call.1} parent=1 // pred_check_branch
      %551 = sbr.rel (0) target = $region73
    $region72: #{tpu_custom_call.1} parent=1 // pred_region
      %553 = dma.done [#allocation4], 128
    $region73: #{tpu_custom_call.1} parent=1 // pred_fallthru
      _
    %554 = vsyncpa [#allocation3], 1
    %555 = vsyncpa [#allocation8], 1
    %556 = vsyncpa [#allocation11], 1
    %557 = vsyncpa [#allocation4], 1
    %558 = vsyncpa [#allocation5], 1

</llo_original>
